<compile_context>
chip_gen: v7x
topology: tpu7x:2x2x1
jax: 0.10.0
libtpu: 0.0.40
codegen_flags: <defaults>
</compile_context>

<pallas_src>
import functools

import jax
import jax.numpy as jnp
from jax.experimental import pallas as pl
from jax.experimental.pallas import tpu as pltpu

EPS = 1e-3
_LANES = 128
_SUBLANES = 8
_MAX_TILE_ROWS = 8192              # 8192*128*4B = 4 MiB per input block per step
_VMEM_LIMIT_BYTES = 32 * 1024 * 1024


def _num_tensorcores():
    """2 TensorCores per chip only on v7x; v5e/v6e are single-TC."""
    try:
        kind = jax.devices()[0].device_kind.lower()
    except Exception:
        return 1
    return 2 if "v7" in kind else 1


def _charbonnier_kernel(x_ref, y_ref, o_ref, *, eps, tile_rows, row_blocks,
                        steps_per_core, valid_rows_last):
    c = pl.program_id(0)                 # "parallel" (per-core) axis
    i = pl.program_id(1)                 # "arbitrary" streaming axis
    g = c * steps_per_core + i           # logical row-block index

    @pl.when(i == 0)
    def _():
        o_ref[...] = jnp.zeros_like(o_ref)

    eps2 = jnp.float32(eps * eps)

    def accumulate(valid_rows):
        xv = x_ref[...].astype(jnp.float32)
        yv = y_ref[...].astype(jnp.float32)
        d = xv - yv
        val = jnp.sqrt(d * d + eps2)     # sqrt -> EUP slot (hidden under DMA)
        if valid_rows is not None and valid_rows < tile_rows:
            # Row-level mask for Pallas tail-block padding only; threshold is a
            # compile-time Python int, so no runtime index arithmetic/overflow.
            row_ids = jax.lax.broadcasted_iota(
                jnp.int32, (tile_rows, _LANES), 0)
            val = jnp.where(row_ids < valid_rows, val, jnp.float32(0.0))
        # Pure-VPU partial reduction into the resident (1, 8, 128) accumulator.
        partial = jnp.sum(
            val.reshape(tile_rows // _SUBLANES, _SUBLANES, _LANES), axis=0)
        o_ref[...] += partial[None, :, :]

    tail_masked = valid_rows_last < tile_rows   # static Python bool

    if not tail_masked:
        # Every block fully valid; only guard against the (possible) duplicated
        # clamped tail step when row_blocks is not a multiple of the core count.
        @pl.when(g < row_blocks)
        def _():
            accumulate(None)
    else:
        @pl.when(g < row_blocks - 1)     # steady state: no masking at all
        def _():
            accumulate(None)

        @pl.when(g == row_blocks - 1)    # single tail block pays for the mask
        def _():
            accumulate(valid_rows_last)


def charbonnier_loss(x, y, eps=EPS):
    assert x.shape == y.shape
    n_valid = x.size
    eps2 = jnp.float32(eps * eps)

    xf = jnp.ravel(x)                    # free reshape of contiguous input
    yf = jnp.ravel(y)

    chunk = _SUBLANES * _LANES           # 1024
    main = (n_valid // chunk) * chunk    # aligned prefix handled by the kernel
    tail = n_valid - main                # < 1024 leftover elements

    total = jnp.float32(0.0)

    if tail:
        # Tiny (<1024 elem) remainder done in plain jnp: avoids any full-array
        # pad/copy while keeping the kernel the only full pass over the data.
        tx = xf[main:].astype(jnp.float32)
        ty = yf[main:].astype(jnp.float32)
        td = tx - ty
        total = total + jnp.sum(jnp.sqrt(td * td + eps2))

    if main:
        rows = main // _LANES            # multiple of 8 by construction
        if tail:
            x2d = xf[:main].reshape(rows, _LANES)
            y2d = yf[:main].reshape(rows, _LANES)
        else:
            x2d = xf.reshape(rows, _LANES)
            y2d = yf.reshape(rows, _LANES)

        tile_rows = min(_MAX_TILE_ROWS, rows)   # mult. of 8, or full array dim
        row_blocks = pl.cdiv(rows, tile_rows)
        n_cores = min(_num_tensorcores(), row_blocks)
        steps = pl.cdiv(row_blocks, n_cores)    # streaming steps per core
        valid_rows_last = rows - (row_blocks - 1) * tile_rows

        def in_index_map(c, i):
            # Clamp so a core's (possibly duplicated) tail step never indexes
            # past the array; the kernel skips its compute via the g guards.
            return (jnp.minimum(c * steps + i, row_blocks - 1), 0)

        kernel = functools.partial(
            _charbonnier_kernel, eps=eps, tile_rows=tile_rows,
            row_blocks=row_blocks, steps_per_core=steps,
            valid_rows_last=valid_rows_last)

        partials = pl.pallas_call(
            kernel,
            out_shape=jax.ShapeDtypeStruct((n_cores, _SUBLANES, _LANES),
                                           jnp.float32),
            grid_spec=pltpu.PrefetchScalarGridSpec(
                num_scalar_prefetch=0,
                grid=(n_cores, steps),
                in_specs=[
                    pl.BlockSpec((tile_rows, _LANES), in_index_map),
                    pl.BlockSpec((tile_rows, _LANES), in_index_map),
                ],
                out_specs=pl.BlockSpec((1, _SUBLANES, _LANES),
                                       lambda c, i: (c, 0, 0)),
            ),
            compiler_params=pltpu.CompilerParams(
                dimension_semantics=("parallel", "arbitrary"),
                vmem_limit_bytes=_VMEM_LIMIT_BYTES),
        )(x2d, y2d)

        total = total + jnp.sum(partials)

    # Tiny final normalization (mean).
    return total / jnp.float32(n_valid)


if __name__ == "__main__":
    key = jax.random.PRNGKey(0)
    kx, ky = jax.random.split(key)
    x = jax.random.normal(kx, (2, 4, 16, 16), dtype=jnp.float32)
    y = jax.random.normal(ky, (2, 4, 16, 16), dtype=jnp.float32)

    loss = jax.block_until_ready(charbonnier_loss(x, y))

    # Reference check (matches the PyTorch module: mean(sqrt(diff^2 + eps^2))).
    diff = x - y
    ref = jnp.mean(jnp.sqrt(diff * diff + EPS * EPS))
    assert jnp.allclose(loss, ref, rtol=1e-5, atol=1e-6), (loss, ref)

    print("KERNEL_OK")
</pallas_src>

<mosaic_0001>
module attributes {stable_mosaic.version = 11 : i64} {
  func.func @_charbonnier_kernel(%arg0: i32, %arg1: i32, %arg2: memref<16x128xf32, #tpu.memory_space<vmem>>, %arg3: memref<16x128xf32, #tpu.memory_space<vmem>>, %arg4: memref<1x8x128xf32, #tpu.memory_space<vmem>>) attributes {dimension_semantics = [#tpu.dimension_semantics<parallel>, #tpu.dimension_semantics<arbitrary>], iteration_bounds = array<i64: 1, 1>, scalar_prefetch = 0 : i64, scratch_operands = 0 : i64, tpu.core_type = #tpu.core_type<tc>, window_params = [{transform_indices = @transform_0, window_bounds = array<i64: 16, 128>}, {transform_indices = @transform_1, window_bounds = array<i64: 16, 128>}, {transform_indices = @transform_2, window_bounds = array<i64: 1, 8, 128>}]} {
    %c1_i32 = arith.constant 1 : i32
    %0 = arith.muli %arg0, %c1_i32 : i32
    %1 = arith.addi %0, %arg1 : i32
    %c0_i32 = arith.constant 0 : i32
    %2 = arith.cmpi eq, %arg1, %c0_i32 : i32
    %3 = arith.extui %2 : i1 to i32
    %c0_i32_0 = arith.constant 0 : i32
    %4 = arith.cmpi ne, %3, %c0_i32_0 : i32
    scf.if %4 {
      %cst_3 = arith.constant 0.000000e+00 : f32
      %8 = vector.broadcast %cst_3 : f32 to vector<1x8x128xf32>
      %c0 = arith.constant 0 : index
      %c0_4 = arith.constant 0 : index
      %c0_5 = arith.constant 0 : index
      %9 = vector.load %arg4[%c0, %c0_4, %c0_5] : memref<1x8x128xf32, #tpu.memory_space<vmem>>, vector<1x8x128xf32>
      tpu.vector_store %arg4[%c0, %c0_4, %c0_5], %8 {strides = array<i32>} : memref<1x8x128xf32, #tpu.memory_space<vmem>>, vector<1x8x128xf32>,
    } else {
    }
    %c1_i32_1 = arith.constant 1 : i32
    %5 = arith.cmpi slt, %1, %c1_i32_1 : i32
    %6 = arith.extui %5 : i1 to i32
    %cst = arith.constant 9.99999997E-7 : f32
    %c0_i32_2 = arith.constant 0 : i32
    %7 = arith.cmpi ne, %6, %c0_i32_2 : i32
    scf.if %7 {
      %c0 = arith.constant 0 : index
      %c0_3 = arith.constant 0 : index
      %8 = vector.load %arg2[%c0, %c0_3] : memref<16x128xf32, #tpu.memory_space<vmem>>, vector<16x128xf32>
      %c0_4 = arith.constant 0 : index
      %c0_5 = arith.constant 0 : index
      %9 = vector.load %arg3[%c0_4, %c0_5] : memref<16x128xf32, #tpu.memory_space<vmem>>, vector<16x128xf32>
      %10 = arith.subf %8, %9 : vector<16x128xf32>
      %11 = arith.mulf %10, %10 : vector<16x128xf32>
      %12 = vector.broadcast %cst : f32 to vector<16x128xf32>
      %13 = arith.addf %11, %12 : vector<16x128xf32>
      %14 = math.sqrt %13 : vector<16x128xf32>
      %15 = vector.shape_cast %14 : vector<16x128xf32> to vector<2x8x128xf32>
      %cst_6 = arith.constant dense<0.000000e+00> : vector<8x128xf32>
      %16 = vector.multi_reduction <add>, %15, %cst_6 [0] : vector<2x8x128xf32> to vector<8x128xf32>
      %c0_7 = arith.constant 0 : index
      %c0_8 = arith.constant 0 : index
      %c0_9 = arith.constant 0 : index
      %17 = vector.load %arg4[%c0_7, %c0_8, %c0_9] : memref<1x8x128xf32, #tpu.memory_space<vmem>>, vector<1x8x128xf32>
      %18 = vector.shape_cast %16 : vector<8x128xf32> to vector<1x8x128xf32>
      %19 = arith.addf %17, %18 : vector<1x8x128xf32>
      %c0_10 = arith.constant 0 : index
      %c0_11 = arith.constant 0 : index
      %c0_12 = arith.constant 0 : index
      %20 = vector.load %arg4[%c0_10, %c0_11, %c0_12] : memref<1x8x128xf32, #tpu.memory_space<vmem>>, vector<1x8x128xf32>
      tpu.vector_store %arg4[%c0_10, %c0_11, %c0_12], %19 {strides = array<i32>} : memref<1x8x128xf32, #tpu.memory_space<vmem>>, vector<1x8x128xf32>,
    } else {
    }
    return
  }
  func.func @transform_0(%arg0: i32, %arg1: i32) -> (i32, i32) {
    %c1_i32 = arith.constant 1 : i32
    %0 = arith.muli %arg0, %c1_i32 : i32
    %1 = arith.addi %0, %arg1 : i32
    %c0_i32 = arith.constant 0 : i32
    %2 = arith.minsi %1, %c0_i32 : i32
    %c0_i32_0 = arith.constant 0 : i32
    %c0_i32_1 = arith.constant 0 : i32
    return %2, %c0_i32_0 : i32, i32
  }
  func.func @transform_1(%arg0: i32, %arg1: i32) -> (i32, i32) {
    %c1_i32 = arith.constant 1 : i32
    %0 = arith.muli %arg0, %c1_i32 : i32
    %1 = arith.addi %0, %arg1 : i32
    %c0_i32 = arith.constant 0 : i32
    %2 = arith.minsi %1, %c0_i32 : i32
    %c0_i32_0 = arith.constant 0 : i32
    %c0_i32_1 = arith.constant 0 : i32
    return %2, %c0_i32_0 : i32, i32
  }
  func.func @transform_2(%arg0: i32, %arg1: i32) -> (i32, i32, i32) {
    %c0_i32 = arith.constant 0 : i32
    %c0_i32_0 = arith.constant 0 : i32
    %c0_i32_1 = arith.constant 0 : i32
    return %arg0, %c0_i32, %c0_i32_0 : i32, i32, i32
  }
}

</mosaic_0001>

<llo_original>
// kernel: tpu_custom_call.1
$region0: #{tpu_custom_call.1}
  #allocation0 [shape = 'u32[]', space=smem, size = 0x4, offset = 0x4, fixed_abs, tag = 'smem constant byte address 0x4 - core index']
  #allocation1 [shape = 'u32[144,128]{1,0:T(1,128)}', space=vmem, size = 0x12000, scoped, tag = 'internal scratch']
  %s0 = inlined_call_operand.hbm [shape: f32[16,128], index: 0, kind: input, shape index: {}]
  %s1 = inlined_call_operand.hbm [shape: f32[16,128], index: 1, kind: input, shape index: {}]
  %s2 = inlined_call_operand.hbm [shape: f32[1,8,128], index: 2, kind: output, shape index: {}]
  %s3 = sld [smem:[#allocation0]]
  $region34: #{tpu_custom_call.1} parent=0
    _
  %s5 = ssub.s32 1, %s3
  %s6 = scalar_select 0, %s5, %s3
  $region1: #{tpu_custom_call.1} parent=0
    #allocation2 [shape = 'u8[8192]{0}', space=vmem, size = 0x2000, scoped, tag = 'input window, operand 0, single buffered']
    #allocation3 [shape = 's32[1]{0}', space=sflag, size = 0x4, scoped, tag = 'scoped memory for tpu_custom_call.1']
    #allocation4 [shape = 's32[1]{0}', space=sflag, size = 0x4, scoped, tag = 'scoped memory for tpu_custom_call.1']
    #allocation5 [shape = 'u8[8192]{0}', space=vmem, size = 0x2000, scoped, tag = 'input window, operand 1, single buffered']
    #allocation6 [shape = 's32[1]{0}', space=sflag, size = 0x4, scoped, tag = 'scoped memory for tpu_custom_call.1']
    #allocation7 [shape = 'u8[4096]{0}', space=vmem, size = 0x1000, scoped, tag = 'output window, operand 0, single buffered']
    %7 = vsyncpa [#allocation3], 0
    %8 = vsyncpa [#allocation6], 0
    %9 = vsyncpa [#allocation4], 0
    // Predicated region
    $region2: #{tpu_custom_call.1} parent=1 // pred_check
      _
    $region3: #{tpu_custom_call.1} parent=1 // pred_check_branch
      %11 = sbr.rel (0) target = $region5
    $region4: #{tpu_custom_call.1} parent=1 // pred_region
      %s12 = sadd.s32 0, 0
      %p13 = scmp.lt.s32.totalorder %s12, 0
      %s14 = scalar_select %p13, %s12, 0
      %s15 = smul.u32 2, %s14
      %s17 = ssub.s32 256, 256
      %18 = vsyncadd [#allocation3], %s17
      %s19 = smul.addr %s15, 128
      %s20 = scalar_lea.hbm %s0, %s19
      %s21 = sshll.u32 [#allocation2], 4
      %s22 = int_to_ptr.vmem [resolvable:$true] %s21
      %27 = dma.hbm_to_vmem [thread:$0]  %s20, 256, %s22, [#allocation3], 128, 128, 8
    $region5: #{tpu_custom_call.1} parent=1 // pred_fallthru
      _
    // Predicated region
    $region6: #{tpu_custom_call.1} parent=1 // pred_check
      _
    $region7: #{tpu_custom_call.1} parent=1 // pred_check_branch
      %29 = sbr.rel (0) target = $region9
    $region8: #{tpu_custom_call.1} parent=1 // pred_region
      %s30 = sadd.s32 0, 0
      %p31 = scmp.lt.s32.totalorder %s30, 0
      %s32 = scalar_select %p31, %s30, 0
      %s33 = smul.u32 2, %s32
      %s35 = ssub.s32 256, 256
      %36 = vsyncadd [#allocation6], %s35
      %s37 = smul.addr %s33, 128
      %s38 = scalar_lea.hbm %s1, %s37
      %s39 = sshll.u32 [#allocation5], 4
      %s40 = int_to_ptr.vmem [resolvable:$true] %s39
      %45 = dma.hbm_to_vmem [thread:$0]  %s38, 256, %s40, [#allocation6], 128, 128, 8
    $region9: #{tpu_custom_call.1} parent=1 // pred_fallthru
      _
    // Predicated region
    $region10: #{tpu_custom_call.1} parent=1 // pred_check
      _
    $region11: #{tpu_custom_call.1} parent=1 // pred_check_branch
      %47 = sbr.rel (0) target = $region13
    $region12: #{tpu_custom_call.1} parent=1 // pred_region
      %48 = dma.done [#allocation3], 256
    $region13: #{tpu_custom_call.1} parent=1 // pred_fallthru
      _
    // Predicated region
    $region14: #{tpu_custom_call.1} parent=1 // pred_check
      _
    $region15: #{tpu_custom_call.1} parent=1 // pred_check_branch
      %50 = sbr.rel (0) target = $region17
    $region16: #{tpu_custom_call.1} parent=1 // pred_region
      %51 = dma.done [#allocation6], 256
    $region17: #{tpu_custom_call.1} parent=1 // pred_fallthru
      _
    %s52 = sadd.s32 0, 0
    %p53 = scmp.lt.s32.totalorder %s52, 0
    %s54 = scalar_select %p53, %s52, 0
    %s55 = smul.u32 2, %s54
    %s56 = sadd.s32 0, 0
    %p57 = scmp.lt.s32.totalorder %s56, 0
    %s58 = scalar_select %p57, %s56, 0
    %s59 = smul.u32 2, %s58
    %s60 = sadd.s32 0, 0
    %p61 = scmp.eq.s32.totalorder 0, 0
    // Predicated region
    $region18: #{tpu_custom_call.1} parent=1 // pred_check
      %p62 = pneg %p61
    $region19: #{tpu_custom_call.1} parent=1 // pred_check_branch
      %64 = sbr.rel (%p62) target = $region21
    $region20: #{tpu_custom_call.1} parent=1 // pred_region
      %65 = vst [vmem:[#allocation7] sm:$0xff] 0.0
    $region21: #{tpu_custom_call.1} parent=1 // pred_fallthru
      _
    %p66 = scmp.lt.s32.totalorder %s60, 1
    // Predicated region
    $region22: #{tpu_custom_call.1} parent=1 // pred_check
      %p67 = pneg %p66
    $region23: #{tpu_custom_call.1} parent=1 // pred_check_branch
      %69 = sbr.rel (%p67) target = $region25
    $region24: #{tpu_custom_call.1} parent=1 // pred_region
      %v70 = vld [vmem:[#allocation2] sm:$0xff]
      %v71 = vld [vmem:[#allocation2 + $0x8] sm:$0xff]
      %v72 = vld [vmem:[#allocation5] sm:$0xff]
      %v73 = vld [vmem:[#allocation5 + $0x8] sm:$0xff]
      %v74 = vsub.f32 %v70, %v72
      %v75 = vsub.f32 %v71, %v73
      %v76 = vmul.f32 %v74, %v74
      %v77 = vmul.f32 %v75, %v75
      %v78 = vadd.f32 %v76, 1e-06
      %v79 = vadd.f32 %v77, 1e-06
      %v80 = vrsqrt.pop %v78
      %v81 = vmul.f32 %v78, %v80
      %vm82 = vcmp.eq.f32.partialorder %v78, inf
      %v83 = vsel %vm82, %v78, %v81
      %vm84 = vcmp.eq.f32.partialorder %v78, 0.0
      %v85 = vand.u32 %v78, 2147483648
      %v86 = vsel %vm84, %v85, %v83
      %v87 = vrsqrt.pop %v79
      %v88 = vmul.f32 %v79, %v87
      %vm89 = vcmp.eq.f32.partialorder %v79, inf
      %v90 = vsel %vm89, %v79, %v88
      %vm91 = vcmp.eq.f32.partialorder %v79, 0.0
      %v92 = vand.u32 %v79, 2147483648
      %v93 = vsel %vm91, %v92, %v90
      %v94 = vadd.f32 %v86, %v93
      %v95 = vld [vmem:[#allocation7] sm:$0xff]
      %v96 = vadd.f32 %v95, %v94
      %97 = vst [vmem:[#allocation7] sm:$0xff] %v96
    $region25: #{tpu_custom_call.1} parent=1 // pred_fallthru
      _
    // Predicated region
    $region26: #{tpu_custom_call.1} parent=1 // pred_check
      _
    $region27: #{tpu_custom_call.1} parent=1 // pred_check_branch
      %99 = sbr.rel (0) target = $region29
    $region28: #{tpu_custom_call.1} parent=1 // pred_region
      %s101 = ssub.s32 128, 128
      %102 = vsyncadd [#allocation4], %s101
      %s104 = sshll.u32 [#allocation7], 4
      %s105 = int_to_ptr.vmem [resolvable:$true] %s104
      %107 = dma.vmem_to_hbm [thread:$0]  %s105, 128, %s2, [#allocation4]
    $region29: #{tpu_custom_call.1} parent=1 // pred_fallthru
      _
    // Predicated region
    $region30: #{tpu_custom_call.1} parent=1 // pred_check
      _
    $region31: #{tpu_custom_call.1} parent=1 // pred_check_branch
      %109 = sbr.rel (0) target = $region33
    $region32: #{tpu_custom_call.1} parent=1 // pred_region
      %110 = dma.done [#allocation4], 128
    $region33: #{tpu_custom_call.1} parent=1 // pred_fallthru
      _
    %111 = vsyncpa [#allocation3], 1
    %112 = vsyncpa [#allocation6], 1
    %113 = vsyncpa [#allocation4], 1

</llo_original>
